<compile_context>
chip_gen: v7x
topology: tpu7x:2x2x1
jax: 0.10.0
libtpu: 0.0.40
codegen_flags: <defaults>
</compile_context>

<pallas_src>
import functools
import math

import jax
import jax.numpy as jnp
from jax.experimental import pallas as pl
from jax.experimental.pallas import tpu as pltpu


def _softplus(x):
    # Numerically stable softplus; same formula used in kernel and reference.
    return jnp.maximum(x, 0.0) + jnp.log1p(jnp.exp(-jnp.abs(x)))


def _round_up(v, m):
    return ((v + m - 1) // m) * m


# ------------------------------ Pallas kernel -------------------------------

def gaussian_linear_kernel(x_ref, wmu_ref, wrho_ref, weps_ref,
                           bmu_ref, brho_ref, beps_ref, o_ref):
    # Reparameterized sample of W^T (K, N) and b (1, N).  Cheap VPU work
    # (K*N elements) relative to the (tm, K) x (K, N) GEMM, so recomputing it
    # per grid step keeps the kernel stateless ("parallel"-safe on megacore).
    w = wmu_ref[...] + _softplus(wrho_ref[...]) * weps_ref[...]
    b = bmu_ref[...] + _softplus(brho_ref[...]) * beps_ref[...]
    acc = jnp.dot(x_ref[...], w, preferred_element_type=jnp.float32,
                  precision=jax.lax.Precision.HIGHEST)
    o_ref[...] = (acc + b).astype(o_ref.dtype)


# -------------------------------- wrapper ------------------------------------

def _sample_eps(key, w_shape, b_shape, dtype):
    # torch.randn_like equivalents, drawn deterministically from `key`.
    kw, kb = jax.random.split(key)
    return (jax.random.normal(kw, w_shape, dtype),
            jax.random.normal(kb, b_shape, dtype))


@functools.partial(jax.jit, static_argnames=("tile_m",))
def gaussian_linear(x, weight_mu, weight_rho, bias_mu, bias_rho, key, *, tile_m=256):
    out_features, in_features = weight_mu.shape
    assert x.shape[-1] == in_features

    eps_w, eps_b = _sample_eps(key, weight_mu.shape, bias_mu.shape, weight_mu.dtype)

    # (K, N) layout so the kernel computes x @ W_s directly (out_features on lanes).
    wmu_t, wrho_t, weps_t = weight_mu.T, weight_rho.T, eps_w.T
    bmu = bias_mu.reshape(1, out_features)
    brho = bias_rho.reshape(1, out_features)
    beps = eps_b.reshape(1, out_features)

    lead = x.shape[:-1]
    x2d = x.reshape(-1, in_features)
    m = x2d.shape[0]

    # Flattened batch tiled along the GEMM M dimension (8-aligned tiles).
    tm = _round_up(min(tile_m, m), 8)
    m_pad = _round_up(m, tm)
    if m_pad != m:
        x2d = jnp.pad(x2d, ((0, m_pad - m), (0, 0)))

    k, n = in_features, out_features
    out = pl.pallas_call(
        gaussian_linear_kernel,
        grid=(m_pad // tm,),
        in_specs=[
            pl.BlockSpec((tm, k), lambda i: (i, 0)),   # x rows (streamed per tile)
            pl.BlockSpec((k, n), lambda i: (0, 0)),    # weight_mu^T   (VMEM-resident)
            pl.BlockSpec((k, n), lambda i: (0, 0)),    # weight_rho^T  (VMEM-resident)
            pl.BlockSpec((k, n), lambda i: (0, 0)),    # eps_w^T       (VMEM-resident)
            pl.BlockSpec((1, n), lambda i: (0, 0)),    # bias_mu
            pl.BlockSpec((1, n), lambda i: (0, 0)),    # bias_rho
            pl.BlockSpec((1, n), lambda i: (0, 0)),    # eps_b
        ],
        out_specs=pl.BlockSpec((tm, n), lambda i: (i, 0)),
        out_shape=jax.ShapeDtypeStruct((m_pad, n), x.dtype),
        compiler_params=pltpu.CompilerParams(
            dimension_semantics=("parallel",)),
    )(x2d, wmu_t, wrho_t, weps_t, bmu, brho, beps)

    return out[:m].reshape(lead + (n,))


# --------------------------- reference (pure JAX) ---------------------------

def reference_forward(x, weight_mu, weight_rho, bias_mu, bias_rho, key):
    eps_w, eps_b = _sample_eps(key, weight_mu.shape, bias_mu.shape, weight_mu.dtype)
    w = weight_mu + _softplus(weight_rho) * eps_w
    b = bias_mu + _softplus(bias_rho) * eps_b
    return jnp.dot(x, w.T, preferred_element_type=jnp.float32,
                   precision=jax.lax.Precision.HIGHEST) + b


# ---------------------------------- main -------------------------------------

if __name__ == "__main__":
    IN_FEATURES, OUT_FEATURES, INIT_SIGMA = 32, 16, 0.1

    root = jax.random.PRNGKey(0)
    k_mu, k_x, k_sample = jax.random.split(root, 3)

    # Parameter init mirroring the PyTorch module:
    #   weight_mu ~ trunc_normal(0, 1/sqrt(in), +-2/sqrt(in)); rho = log(e^sigma - 1).
    sigma_weights = 1.0 / math.sqrt(IN_FEATURES)
    weight_mu = sigma_weights * jax.random.truncated_normal(
        k_mu, -2.0, 2.0, (OUT_FEATURES, IN_FEATURES), jnp.float32)
    init_rho = math.log(math.exp(INIT_SIGMA) - 1.0)
    weight_rho = jnp.full((OUT_FEATURES, IN_FEATURES), init_rho, jnp.float32)
    bias_mu = jnp.zeros((OUT_FEATURES,), jnp.float32)
    bias_rho = jnp.full((OUT_FEATURES,), init_rho, jnp.float32)

    # x: (batch=2, seq=8, in_features=32); F.linear applies over the last dim.
    x = jax.random.normal(k_x, (2, 8, IN_FEATURES), jnp.float32)

    out = gaussian_linear(x, weight_mu, weight_rho, bias_mu, bias_rho, k_sample)
    out = jax.block_until_ready(out)
    assert out.shape == (2, 8, OUT_FEATURES) and out.dtype == jnp.float32

    ref = jax.block_until_ready(
        reference_forward(x, weight_mu, weight_rho, bias_mu, bias_rho, k_sample))
    assert jnp.allclose(out, ref, rtol=1e-4, atol=1e-4), (out, ref)

    print("KERNEL_OK")
</pallas_src>

<mosaic_0001>
module attributes {stable_mosaic.version = 11 : i64} {
  func.func @gaussian_linear_kernel(%arg0: i32, %arg1: memref<16x32xf32, #tpu.memory_space<vmem>>, %arg2: memref<32x16xf32, #tpu.memory_space<vmem>>, %arg3: memref<32x16xf32, #tpu.memory_space<vmem>>, %arg4: memref<32x16xf32, #tpu.memory_space<vmem>>, %arg5: memref<1x16xf32, #tpu.memory_space<vmem>>, %arg6: memref<1x16xf32, #tpu.memory_space<vmem>>, %arg7: memref<1x16xf32, #tpu.memory_space<vmem>>, %arg8: memref<16x16xf32, #tpu.memory_space<vmem>>) attributes {dimension_semantics = [#tpu.dimension_semantics<parallel>], iteration_bounds = array<i64: 1>, scalar_prefetch = 0 : i64, scratch_operands = 0 : i64, tpu.core_type = #tpu.core_type<tc>, window_params = [{transform_indices = @transform_0, window_bounds = array<i64: 16, 32>}, {pipeline_mode = #tpu.pipeline_mode<synchronous>, transform_indices = @transform_1, window_bounds = array<i64: 32, 16>}, {pipeline_mode = #tpu.pipeline_mode<synchronous>, transform_indices = @transform_2, window_bounds = array<i64: 32, 16>}, {pipeline_mode = #tpu.pipeline_mode<synchronous>, transform_indices = @transform_3, window_bounds = array<i64: 32, 16>}, {pipeline_mode = #tpu.pipeline_mode<synchronous>, transform_indices = @transform_4, window_bounds = array<i64: 1, 16>}, {pipeline_mode = #tpu.pipeline_mode<synchronous>, transform_indices = @transform_5, window_bounds = array<i64: 1, 16>}, {pipeline_mode = #tpu.pipeline_mode<synchronous>, transform_indices = @transform_6, window_bounds = array<i64: 1, 16>}, {transform_indices = @transform_7, window_bounds = array<i64: 16, 16>}]} {
    %c0 = arith.constant 0 : index
    %c0_0 = arith.constant 0 : index
    %0 = vector.load %arg2[%c0, %c0_0] : memref<32x16xf32, #tpu.memory_space<vmem>>, vector<32x16xf32>
    %c0_1 = arith.constant 0 : index
    %c0_2 = arith.constant 0 : index
    %1 = vector.load %arg3[%c0_1, %c0_2] : memref<32x16xf32, #tpu.memory_space<vmem>>, vector<32x16xf32>
    %cst = arith.constant 0.000000e+00 : f32
    %2 = vector.broadcast %cst : f32 to vector<32x16xf32>
    %3 = arith.maximumf %1, %2 : vector<32x16xf32>
    %4 = math.absf %1 : vector<32x16xf32>
    %cst_3 = arith.constant 0.000000e+00 : f32
    %5 = vector.broadcast %cst_3 : f32 to vector<32x16xf32>
    %6 = arith.subf %5, %4 : vector<32x16xf32>
    %7 = math.exp %6 : vector<32x16xf32>
    %8 = math.log1p %7 : vector<32x16xf32>
    %9 = arith.addf %3, %8 : vector<32x16xf32>
    %c0_4 = arith.constant 0 : index
    %c0_5 = arith.constant 0 : index
    %10 = vector.load %arg4[%c0_4, %c0_5] : memref<32x16xf32, #tpu.memory_space<vmem>>, vector<32x16xf32>
    %11 = arith.mulf %9, %10 : vector<32x16xf32>
    %12 = arith.addf %0, %11 : vector<32x16xf32>
    %c0_6 = arith.constant 0 : index
    %c0_7 = arith.constant 0 : index
    %13 = vector.load %arg5[%c0_6, %c0_7] : memref<1x16xf32, #tpu.memory_space<vmem>>, vector<1x16xf32>
    %c0_8 = arith.constant 0 : index
    %c0_9 = arith.constant 0 : index
    %14 = vector.load %arg6[%c0_8, %c0_9] : memref<1x16xf32, #tpu.memory_space<vmem>>, vector<1x16xf32>
    %cst_10 = arith.constant 0.000000e+00 : f32
    %15 = vector.broadcast %cst_10 : f32 to vector<1x16xf32>
    %16 = arith.maximumf %14, %15 : vector<1x16xf32>
    %17 = math.absf %14 : vector<1x16xf32>
    %cst_11 = arith.constant 0.000000e+00 : f32
    %18 = vector.broadcast %cst_11 : f32 to vector<1x16xf32>
    %19 = arith.subf %18, %17 : vector<1x16xf32>
    %20 = math.exp %19 : vector<1x16xf32>
    %21 = math.log1p %20 : vector<1x16xf32>
    %22 = arith.addf %16, %21 : vector<1x16xf32>
    %c0_12 = arith.constant 0 : index
    %c0_13 = arith.constant 0 : index
    %23 = vector.load %arg7[%c0_12, %c0_13] : memref<1x16xf32, #tpu.memory_space<vmem>>, vector<1x16xf32>
    %24 = arith.mulf %22, %23 : vector<1x16xf32>
    %25 = arith.addf %13, %24 : vector<1x16xf32>
    %c0_14 = arith.constant 0 : index
    %c0_15 = arith.constant 0 : index
    %26 = vector.load %arg1[%c0_14, %c0_15] : memref<16x32xf32, #tpu.memory_space<vmem>>, vector<16x32xf32>
    %cst_16 = arith.constant dense<0.000000e+00> : vector<16x16xf32>
    %27 = tpu.matmul %26, %12, %cst_16 {dimension_numbers = #tpu.dot_dimension_numbers<[1], [0], [0], [1], [0, 0, 1, 1], [], []>, precision = #tpu.contract_precision<fp32>} : vector<16x32xf32>, vector<32x16xf32>, vector<16x16xf32> -> vector<16x16xf32>
    %28 = vector.broadcast %25 : vector<1x16xf32> to vector<16x16xf32>
    %29 = arith.addf %27, %28 : vector<16x16xf32>
    %c0_17 = arith.constant 0 : index
    %c0_18 = arith.constant 0 : index
    %30 = vector.load %arg8[%c0_17, %c0_18] : memref<16x16xf32, #tpu.memory_space<vmem>>, vector<16x16xf32>
    tpu.vector_store %arg8[%c0_17, %c0_18], %29 {strides = array<i32>} : memref<16x16xf32, #tpu.memory_space<vmem>>, vector<16x16xf32>,
    return
  }
  func.func @transform_0(%arg0: i32) -> (i32, i32) {
    %c0_i32 = arith.constant 0 : i32
    %c0_i32_0 = arith.constant 0 : i32
    return %arg0, %c0_i32 : i32, i32
  }
  func.func @transform_1(%arg0: i32) -> (i32, i32) {
    %c0_i32 = arith.constant 0 : i32
    %c0_i32_0 = arith.constant 0 : i32
    %c0_i32_1 = arith.constant 0 : i32
    return %c0_i32, %c0_i32_0 : i32, i32
  }
  func.func @transform_2(%arg0: i32) -> (i32, i32) {
    %c0_i32 = arith.constant 0 : i32
    %c0_i32_0 = arith.constant 0 : i32
    %c0_i32_1 = arith.constant 0 : i32
    return %c0_i32, %c0_i32_0 : i32, i32
  }
  func.func @transform_3(%arg0: i32) -> (i32, i32) {
    %c0_i32 = arith.constant 0 : i32
    %c0_i32_0 = arith.constant 0 : i32
    %c0_i32_1 = arith.constant 0 : i32
    return %c0_i32, %c0_i32_0 : i32, i32
  }
  func.func @transform_4(%arg0: i32) -> (i32, i32) {
    %c0_i32 = arith.constant 0 : i32
    %c0_i32_0 = arith.constant 0 : i32
    %c0_i32_1 = arith.constant 0 : i32
    return %c0_i32, %c0_i32_0 : i32, i32
  }
  func.func @transform_5(%arg0: i32) -> (i32, i32) {
    %c0_i32 = arith.constant 0 : i32
    %c0_i32_0 = arith.constant 0 : i32
    %c0_i32_1 = arith.constant 0 : i32
    return %c0_i32, %c0_i32_0 : i32, i32
  }
  func.func @transform_6(%arg0: i32) -> (i32, i32) {
    %c0_i32 = arith.constant 0 : i32
    %c0_i32_0 = arith.constant 0 : i32
    %c0_i32_1 = arith.constant 0 : i32
    return %c0_i32, %c0_i32_0 : i32, i32
  }
  func.func @transform_7(%arg0: i32) -> (i32, i32) {
    %c0_i32 = arith.constant 0 : i32
    %c0_i32_0 = arith.constant 0 : i32
    return %arg0, %c0_i32 : i32, i32
  }
}

</mosaic_0001>

<llo_original>
// kernel: gaussian_linear.1
$region0: #{gaussian_linear.1}
  #allocation0 [shape = 'u32[]', space=smem, size = 0x4, offset = 0x4, fixed_abs, tag = 'smem constant byte address 0x4 - core index']
  #allocation1 [shape = 'u32[144,128]{1,0:T(1,128)}', space=vmem, size = 0x12000, scoped, tag = 'internal scratch']
  %s0 = inlined_call_operand.vmem [shape: f32[16,32], index: 0, kind: input, shape index: {}]
  %s1 = inlined_call_operand.vmem [shape: f32[32,16], index: 1, kind: input, shape index: {}]
  %s2 = inlined_call_operand.vmem [shape: f32[32,16], index: 2, kind: input, shape index: {}]
  %s3 = inlined_call_operand.vmem [shape: f32[32,16], index: 3, kind: input, shape index: {}]
  %s4 = inlined_call_operand.vmem [shape: f32[1,16], index: 4, kind: input, shape index: {}]
  %s5 = inlined_call_operand.vmem [shape: f32[1,16], index: 5, kind: input, shape index: {}]
  %s6 = inlined_call_operand.vmem [shape: f32[1,16], index: 6, kind: input, shape index: {}]
  %s7 = inlined_call_operand.hbm [shape: f32[16,16], index: 7, kind: output, shape index: {}]
  %s8 = sld [smem:[#allocation0]]
  $region38: #{gaussian_linear.1} parent=0
    _
  %s10 = ssub.s32 1, %s8
  %s11 = scalar_select 0, %s10, %s8
  $region1: #{gaussian_linear.1} parent=0
    #allocation2 [shape = 'u8[8192]{0}', space=vmem, size = 0x2000, scoped, tag = 'output window, operand 0, single buffered']
    #allocation3 [shape = 's32[1]{0}', space=sflag, size = 0x4, scoped, tag = 'scoped memory for gaussian_linear.1']
    %12 = vsyncpa [#allocation3], 0
    // Predicated region
    $region2: #{gaussian_linear.1} parent=1 // pred_check
      _
    $region3: #{gaussian_linear.1} parent=1 // pred_check_branch
      %14 = sbr.rel (0) target = $region5
    $region4: #{gaussian_linear.1} parent=1 // pred_region
      _
    $region5: #{gaussian_linear.1} parent=1 // pred_fallthru
      _
    // Predicated region
    $region6: #{gaussian_linear.1} parent=1 // pred_check
      _
    $region7: #{gaussian_linear.1} parent=1 // pred_check_branch
      %16 = sbr.rel (0) target = $region9
    $region8: #{gaussian_linear.1} parent=1 // pred_region
      _
    $region9: #{gaussian_linear.1} parent=1 // pred_fallthru
      _
    // Predicated region
    $region10: #{gaussian_linear.1} parent=1 // pred_check
      _
    $region11: #{gaussian_linear.1} parent=1 // pred_check_branch
      %18 = sbr.rel (0) target = $region13
    $region12: #{gaussian_linear.1} parent=1 // pred_region
      _
    $region13: #{gaussian_linear.1} parent=1 // pred_fallthru
      _
    // Predicated region
    $region14: #{gaussian_linear.1} parent=1 // pred_check
      _
    $region15: #{gaussian_linear.1} parent=1 // pred_check_branch
      %20 = sbr.rel (0) target = $region17
    $region16: #{gaussian_linear.1} parent=1 // pred_region
      _
    $region17: #{gaussian_linear.1} parent=1 // pred_fallthru
      _
    // Predicated region
    $region18: #{gaussian_linear.1} parent=1 // pred_check
      _
    $region19: #{gaussian_linear.1} parent=1 // pred_check_branch
      %22 = sbr.rel (0) target = $region21
    $region20: #{gaussian_linear.1} parent=1 // pred_region
      _
    $region21: #{gaussian_linear.1} parent=1 // pred_fallthru
      _
    // Predicated region
    $region22: #{gaussian_linear.1} parent=1 // pred_check
      _
    $region23: #{gaussian_linear.1} parent=1 // pred_check_branch
      %24 = sbr.rel (0) target = $region25
    $region24: #{gaussian_linear.1} parent=1 // pred_region
      _
    $region25: #{gaussian_linear.1} parent=1 // pred_fallthru
      _
    // Predicated region
    $region26: #{gaussian_linear.1} parent=1 // pred_check
      _
    $region27: #{gaussian_linear.1} parent=1 // pred_check_branch
      %26 = sbr.rel (0) target = $region29
    $region28: #{gaussian_linear.1} parent=1 // pred_region
      _
    $region29: #{gaussian_linear.1} parent=1 // pred_fallthru
      _
    %v27 = vld [vmem:[%s1] sm:$0xff]
    %v28 = vld [vmem:[%s1 + $0x8] sm:$0xff]
    %v29 = vld [vmem:[%s1 + $0x10] sm:$0xff]
    %v30 = vld [vmem:[%s1 + $0x18] sm:$0xff]
    %v31 = vld [vmem:[%s2] sm:$0xff]
    %v32 = vld [vmem:[%s2 + $0x8] sm:$0xff]
    %v33 = vld [vmem:[%s2 + $0x10] sm:$0xff]
    %v34 = vld [vmem:[%s2 + $0x18] sm:$0xff]
    %v35 = vmax.f32 %v31, 0.0
    %v36 = vmax.f32 %v32, 0.0
    %v37 = vmax.f32 %v33, 0.0
    %v38 = vmax.f32 %v34, 0.0
    %v39 = vand.u32 2147483647, %v31
    %v40 = vand.u32 2147483647, %v32
    %v41 = vand.u32 2147483647, %v33
    %v42 = vand.u32 2147483647, %v34
    %v43 = vsub.f32 0.0, %v39
    %v44 = vsub.f32 0.0, %v40
    %v45 = vsub.f32 0.0, %v41
    %v46 = vsub.f32 0.0, %v42
    %v47 = vmul.f32 %v43, 1.442695
    %v48 = vpow.pop %v47
    %v49 = vmul.f32 %v44, 1.442695
    %v50 = vpow.pop %v49
    %v51 = vmul.f32 %v45, 1.442695
    %v52 = vpow.pop %v51
    %v53 = vmul.f32 %v46, 1.442695
    %v54 = vpow.pop %v53
    %v55 = vadd.f32 %v48, 1.0
    %v56 = vlog2.pop %v55
    %v57 = vmul.f32 %v56, 0.6931472
    %v58 = vmul.f32 -0.5, %v48
    %v59 = vadd.f32 %v58, 1.0
    %v60 = vmul.f32 %v59, %v48
    %v61 = vand.u32 2147483647, %v48
    %vm62 = vcmp.lt.f32.partialorder %v61, 0.0004427343
    %v63 = vsel %vm62, %v60, %v57
    %v64 = vadd.f32 %v50, 1.0
    %v65 = vlog2.pop %v64
    %v66 = vmul.f32 %v65, 0.6931472
    %v67 = vmul.f32 -0.5, %v50
    %v68 = vadd.f32 %v67, 1.0
    %v69 = vmul.f32 %v68, %v50
    %v70 = vand.u32 2147483647, %v50
    %vm71 = vcmp.lt.f32.partialorder %v70, 0.0004427343
    %v72 = vsel %vm71, %v69, %v66
    %v73 = vadd.f32 %v52, 1.0
    %v74 = vlog2.pop %v73
    %v75 = vmul.f32 %v74, 0.6931472
    %v76 = vmul.f32 -0.5, %v52
    %v77 = vadd.f32 %v76, 1.0
    %v78 = vmul.f32 %v77, %v52
    %v79 = vand.u32 2147483647, %v52
    %vm80 = vcmp.lt.f32.partialorder %v79, 0.0004427343
    %v81 = vsel %vm80, %v78, %v75
    %v82 = vadd.f32 %v54, 1.0
    %v83 = vlog2.pop %v82
    %v84 = vmul.f32 %v83, 0.6931472
    %v85 = vmul.f32 -0.5, %v54
    %v86 = vadd.f32 %v85, 1.0
    %v87 = vmul.f32 %v86, %v54
    %v88 = vand.u32 2147483647, %v54
    %vm89 = vcmp.lt.f32.partialorder %v88, 0.0004427343
    %v90 = vsel %vm89, %v87, %v84
    %v91 = vadd.f32 %v35, %v63
    %v92 = vadd.f32 %v36, %v72
    %v93 = vadd.f32 %v37, %v81
    %v94 = vadd.f32 %v38, %v90
    %v95 = vld [vmem:[%s3] sm:$0xff]
    %v96 = vld [vmem:[%s3 + $0x8] sm:$0xff]
    %v97 = vld [vmem:[%s3 + $0x10] sm:$0xff]
    %v98 = vld [vmem:[%s3 + $0x18] sm:$0xff]
    %v99 = vmul.f32 %v91, %v95
    %v100 = vmul.f32 %v92, %v96
    %v101 = vmul.f32 %v93, %v97
    %v102 = vmul.f32 %v94, %v98
    %v103 = vadd.f32 %v27, %v99
    %v104 = vadd.f32 %v28, %v100
    %v105 = vadd.f32 %v29, %v101
    %v106 = vadd.f32 %v30, %v102
    %v107 = vld [vmem:[%s4] sm:$0x1]
    %v108 = vld [vmem:[%s5] sm:$0x1]
    %v109 = vmax.f32 %v108, 0.0
    %v110 = vand.u32 2147483647, %v108
    %v111 = vsub.f32 0.0, %v110
    %v112 = vmul.f32 %v111, 1.442695
    %v113 = vpow.pop %v112
    %v114 = vadd.f32 %v113, 1.0
    %v115 = vlog2.pop %v114
    %v116 = vmul.f32 %v115, 0.6931472
    %v117 = vmul.f32 -0.5, %v113
    %v118 = vadd.f32 %v117, 1.0
    %v119 = vmul.f32 %v118, %v113
    %v120 = vand.u32 2147483647, %v113
    %vm121 = vcmp.lt.f32.partialorder %v120, 0.0004427343
    %v122 = vsel %vm121, %v119, %v116
    %v123 = vadd.f32 %v109, %v122
    %v124 = vld [vmem:[%s6] sm:$0x1]
    %v125 = vmul.f32 %v123, %v124
    %v126 = vadd.f32 %v107, %v125
    %v127 = vld [vmem:[%s0] sm:$0xff]
    %v128 = vld [vmem:[%s0 + $0x8] sm:$0xff]
    %v130 = vlaneseq
    %v131 = vshrl.u32 %v130, 7
    %v132 = vsub.s32 0, %v131
    %v133 = vrot.slane %v126, %v132
    %vm135 = vcmask 261120
    %v137 = vsel %vm135, %v127, 0
    %v140 = vsel %vm135, %v128, 0
    %142 = vmatprep.subr.mxu0 0.0
    %v143 = vand.u32 %v103, 4294901760
    %144 = vmatpush1.msra.mxu0 %v143
    %145 = vmatprep.subr.mxu0 0.0
    %v146 = vand.u32 %v104, 4294901760
    %147 = vmatpush1.msra.mxu0 %v146
    %148 = vmatprep.subr.mxu0 0.0
    %v149 = vand.u32 %v105, 4294901760
    %150 = vmatpush1.msra.mxu0 %v149
    %151 = vmatprep.subr.mxu0 0.0
    %v152 = vand.u32 %v106, 4294901760
    %153 = vmatpush1.msra.mxu0 %v152
    %154 = vmatprep.subr.mxu0 0.0
    %155 = vmatpush1.msra.mxu0 0.0
    %156 = vmatprep.subr.mxu0 0.0
    %157 = vmatpush1.msra.mxu0 0.0
    %158 = vmatprep.subr.mxu0 0.0
    %159 = vmatpush1.msra.mxu0 0.0
    %160 = vmatprep.subr.mxu0 0.0
    %161 = vmatpush1.msra.mxu0 0.0
    %162 = vmatprep.subr.mxu0 0.0
    %163 = vmatpush1.msra.mxu0 0.0
    %164 = vmatprep.subr.mxu0 0.0
    %165 = vmatpush1.msra.mxu0 0.0
    %166 = vmatprep.subr.mxu0 0.0
    %167 = vmatpush1.msra.mxu0 0.0
    %168 = vmatprep.subr.mxu0 0.0
    %169 = vmatpush1.msra.mxu0 0.0
    %170 = vmatprep.subr.mxu0 0.0
    %171 = vmatpush1.msra.mxu0 0.0
    %172 = vmatprep.subr.mxu0 0.0
    %173 = vmatpush1.msra.mxu0 0.0
    %174 = vmatprep.subr.mxu0 0.0
    %175 = vmatpush1.msra.mxu0 0.0
    %176 = vmatprep.subr.mxu0 0.0
    %177 = vmatpush1.msra.mxu0 0.0
    %178 = vmatprep.subr.mxu0 0.0
    %179 = vmatpush1.msra.mxu0 0.0
    %180 = vmatprep.subr.mxu0 0.0
    %181 = vmatpush1.msra.mxu0 0.0
    %182 = vmatprep.subr.mxu0 0.0
    %183 = vmatpush1.msra.mxu0 0.0
    %184 = vmatprep.subr.mxu0 0.0
    %185 = vmatpush1.msra.mxu0 0.0
    %186 = vmatprep.subr.mxu0 0.0
    %187 = vmatpush1.msra.mxu0 0.0
    %188 = vmatprep.subr.mxu0 0.0
    %189 = vmatpush1.msra.mxu0 0.0
    %190 = vmatprep.subr.mxu0 0.0
    %191 = vmatpush1.msra.mxu0 0.0
    %192 = vmatprep.subr.mxu0 0.0
    %193 = vmatpush1.msra.mxu0 0.0
    %194 = vmatprep.subr.mxu0 0.0
    %195 = vmatpush1.msra.mxu0 0.0
    %196 = vmatprep.subr.mxu0 0.0
    %197 = vmatpush1.msra.mxu0 0.0
    %198 = vmatprep.subr.mxu0 0.0
    %199 = vmatpush1.msra.mxu0 0.0
    %200 = vmatprep.subr.mxu0 0.0
    %201 = vmatpush1.msra.mxu0 0.0
    %202 = vmatprep.subr.mxu0 0.0
    %203 = vmatpush1.msra.mxu0 0.0
    %204 = vmatprep.subr.mxu0 0.0
    %205 = vmatpush1.msra.mxu0 0.0
    %206 = vmatprep.subr.mxu0 0.0
    %207 = vmatpush1.msra.mxu0 0.0
    %208 = vmatprep.subr.mxu0 0.0
    %209 = vmatpush1.msra.mxu0 0.0
    %210 = vmatprep.mubr.f32.mxu0 0.0
    %v211 = vand.u32 %v137, 4294901760
    %v212 = vsub.f32 %v137, %v211
    %v213 = vand.u32 %v212, 4294901760
    %v214 = vsub.f32 %v212, %v213
    %v215 = vand.u32 %v214, 4294901760
    %216 = vmatmul.mubr.f32.gmra.mrb[0].mxu0 %v215
    %v217 = vpop.f32.mrb[0].mxu0
    %v218 = vadd.f32 %v133, %v217
    %v219 = vpop.f32.mrb[0].mxu0
    %220 = vmatprep.mubr.f32.mxu0 0.0
    %v221 = vand.u32 %v140, 4294901760
    %v222 = vsub.f32 %v140, %v221
    %v223 = vand.u32 %v222, 4294901760
    %v224 = vsub.f32 %v222, %v223
    %v225 = vand.u32 %v224, 4294901760
    %226 = vmatmul.mubr.f32.gmra.mrb[0].mxu0 %v225
    %v227 = vpop.f32.mrb[0].mxu0
    %v228 = vadd.f32 %v133, %v227
    %v229 = vpop.f32.mrb[0].mxu0
    %230 = vdwg.mxu0
    %231 = vmatprep.subr.mxu0 0.0
    %v232 = vand.u32 %v103, 4294901760
    %v233 = vsub.f32 %v103, %v232
    %v234 = vand.u32 %v233, 4294901760
    %v235 = vsub.f32 %v233, %v234
    %v236 = vand.u32 %v235, 4294901760
    %237 = vmatpush1.msra.mxu0 %v236
    %238 = vmatprep.subr.mxu0 0.0
    %v239 = vand.u32 %v104, 4294901760
    %v240 = vsub.f32 %v104, %v239
    %v241 = vand.u32 %v240, 4294901760
    %v242 = vsub.f32 %v240, %v241
    %v243 = vand.u32 %v242, 4294901760
    %244 = vmatpush1.msra.mxu0 %v243
    %245 = vmatprep.subr.mxu0 0.0
    %v246 = vand.u32 %v105, 4294901760
    %v247 = vsub.f32 %v105, %v246
    %v248 = vand.u32 %v247, 4294901760
    %v249 = vsub.f32 %v247, %v248
    %v250 = vand.u32 %v249, 4294901760
    %251 = vmatpush1.msra.mxu0 %v250
    %252 = vmatprep.subr.mxu0 0.0
    %v253 = vand.u32 %v106, 4294901760
    %v254 = vsub.f32 %v106, %v253
    %v255 = vand.u32 %v254, 4294901760
    %v256 = vsub.f32 %v254, %v255
    %v257 = vand.u32 %v256, 4294901760
    %258 = vmatpush1.msra.mxu0 %v257
    %259 = vmatprep.subr.mxu0 0.0
    %260 = vmatpush1.msra.mxu0 0.0
    %261 = vmatprep.subr.mxu0 0.0
    %262 = vmatpush1.msra.mxu0 0.0
    %263 = vmatprep.subr.mxu0 0.0
    %264 = vmatpush1.msra.mxu0 0.0
    %265 = vmatprep.subr.mxu0 0.0
    %266 = vmatpush1.msra.mxu0 0.0
    %267 = vmatprep.subr.mxu0 0.0
    %268 = vmatpush1.msra.mxu0 0.0
    %269 = vmatprep.subr.mxu0 0.0
    %270 = vmatpush1.msra.mxu0 0.0
    %271 = vmatprep.subr.mxu0 0.0
    %272 = vmatpush1.msra.mxu0 0.0
    %273 = vmatprep.subr.mxu0 0.0
    %274 = vmatpush1.msra.mxu0 0.0
    %275 = vmatprep.subr.mxu0 0.0
    %276 = vmatpush1.msra.mxu0 0.0
    %277 = vmatprep.subr.mxu0 0.0
    %278 = vmatpush1.msra.mxu0 0.0
    %279 = vmatprep.subr.mxu0 0.0
    %280 = vmatpush1.msra.mxu0 0.0
    %281 = vmatprep.subr.mxu0 0.0
    %282 = vmatpush1.msra.mxu0 0.0
    %283 = vmatprep.subr.mxu0 0.0
    %284 = vmatpush1.msra.mxu0 0.0
    %285 = vmatprep.subr.mxu0 0.0
    %286 = vmatpush1.msra.mxu0 0.0
    %287 = vmatprep.subr.mxu0 0.0
    %288 = vmatpush1.msra.mxu0 0.0
    %289 = vmatprep.subr.mxu0 0.0
    %290 = vmatpush1.msra.mxu0 0.0
    %291 = vmatprep.subr.mxu0 0.0
    %292 = vmatpush1.msra.mxu0 0.0
    %293 = vmatprep.subr.mxu0 0.0
    %294 = vmatpush1.msra.mxu0 0.0
    %295 = vmatprep.subr.mxu0 0.0
    %296 = vmatpush1.msra.mxu0 0.0
    %297 = vmatprep.subr.mxu0 0.0
    %298 = vmatpush1.msra.mxu0 0.0
    %299 = vmatprep.subr.mxu0 0.0
    %300 = vmatpush1.msra.mxu0 0.0
    %301 = vmatprep.subr.mxu0 0.0
    %302 = vmatpush1.msra.mxu0 0.0
    %303 = vmatprep.subr.mxu0 0.0
    %304 = vmatpush1.msra.mxu0 0.0
    %305 = vmatprep.subr.mxu0 0.0
    %306 = vmatpush1.msra.mxu0 0.0
    %307 = vmatprep.subr.mxu0 0.0
    %308 = vmatpush1.msra.mxu0 0.0
    %309 = vmatprep.subr.mxu0 0.0
    %310 = vmatpush1.msra.mxu0 0.0
    %311 = vmatprep.subr.mxu0 0.0
    %312 = vmatpush1.msra.mxu0 0.0
    %313 = vmatprep.subr.mxu0 0.0
    %314 = vmatpush1.msra.mxu0 0.0
    %315 = vmatprep.mubr.f32.mxu0 0.0
    %v316 = vand.u32 %v137, 4294901760
    %317 = vmatmul.mubr.f32.gmra.mrb[0].mxu0 %v316
    %v318 = vpop.f32.mrb[0].mxu0
    %v319 = vadd.f32 %v218, %v318
    %v320 = vpop.f32.mrb[0].mxu0
    %321 = vmatprep.mubr.f32.mxu0 0.0
    %v322 = vand.u32 %v140, 4294901760
    %323 = vmatmul.mubr.f32.gmra.mrb[0].mxu0 %v322
    %v324 = vpop.f32.mrb[0].mxu0
    %v325 = vadd.f32 %v228, %v324
    %v326 = vpop.f32.mrb[0].mxu0
    %327 = vdwg.mxu0
    %328 = vmatprep.subr.mxu0 0.0
    %v329 = vand.u32 %v103, 4294901760
    %v330 = vsub.f32 %v103, %v329
    %331 = vmatpush1.msra.mxu0 %v330
    %332 = vmatprep.subr.mxu0 0.0
    %v333 = vand.u32 %v104, 4294901760
    %v334 = vsub.f32 %v104, %v333
    %335 = vmatpush1.msra.mxu0 %v334
    %336 = vmatprep.subr.mxu0 0.0
    %v337 = vand.u32 %v105, 4294901760
    %v338 = vsub.f32 %v105, %v337
    %339 = vmatpush1.msra.mxu0 %v338
    %340 = vmatprep.subr.mxu0 0.0
    %v341 = vand.u32 %v106, 4294901760
    %v342 = vsub.f32 %v106, %v341
    %343 = vmatpush1.msra.mxu0 %v342
    %344 = vmatprep.subr.mxu0 0.0
    %345 = vmatpush1.msra.mxu0 0.0
    %346 = vmatprep.subr.mxu0 0.0
    %347 = vmatpush1.msra.mxu0 0.0
    %348 = vmatprep.subr.mxu0 0.0
    %349 = vmatpush1.msra.mxu0 0.0
    %350 = vmatprep.subr.mxu0 0.0
    %351 = vmatpush1.msra.mxu0 0.0
    %352 = vmatprep.subr.mxu0 0.0
    %353 = vmatpush1.msra.mxu0 0.0
    %354 = vmatprep.subr.mxu0 0.0
    %355 = vmatpush1.msra.mxu0 0.0
    %356 = vmatprep.subr.mxu0 0.0
    %357 = vmatpush1.msra.mxu0 0.0
    %358 = vmatprep.subr.mxu0 0.0
    %359 = vmatpush1.msra.mxu0 0.0
    %360 = vmatprep.subr.mxu0 0.0
    %361 = vmatpush1.msra.mxu0 0.0
    %362 = vmatprep.subr.mxu0 0.0
    %363 = vmatpush1.msra.mxu0 0.0
    %364 = vmatprep.subr.mxu0 0.0
    %365 = vmatpush1.msra.mxu0 0.0
    %366 = vmatprep.subr.mxu0 0.0
    %367 = vmatpush1.msra.mxu0 0.0
    %368 = vmatprep.subr.mxu0 0.0
    %369 = vmatpush1.msra.mxu0 0.0
    %370 = vmatprep.subr.mxu0 0.0
    %371 = vmatpush1.msra.mxu0 0.0
    %372 = vmatprep.subr.mxu0 0.0
    %373 = vmatpush1.msra.mxu0 0.0
    %374 = vmatprep.subr.mxu0 0.0
    %375 = vmatpush1.msra.mxu0 0.0
    %376 = vmatprep.subr.mxu0 0.0
    %377 = vmatpush1.msra.mxu0 0.0
    %378 = vmatprep.subr.mxu0 0.0
    %379 = vmatpush1.msra.mxu0 0.0
    %380 = vmatprep.subr.mxu0 0.0
    %381 = vmatpush1.msra.mxu0 0.0
    %382 = vmatprep.subr.mxu0 0.0
    %383 = vmatpush1.msra.mxu0 0.0
    %384 = vmatprep.subr.mxu0 0.0
    %385 = vmatpush1.msra.mxu0 0.0
    %386 = vmatprep.subr.mxu0 0.0
    %387 = vmatpush1.msra.mxu0 0.0
    %388 = vmatprep.subr.mxu0 0.0
    %389 = vmatpush1.msra.mxu0 0.0
    %390 = vmatprep.subr.mxu0 0.0
    %391 = vmatpush1.msra.mxu0 0.0
    %392 = vmatprep.subr.mxu0 0.0
    %393 = vmatpush1.msra.mxu0 0.0
    %394 = vmatprep.subr.mxu0 0.0
    %395 = vmatpush1.msra.mxu0 0.0
    %396 = vmatprep.subr.mxu0 0.0
    %397 = vmatpush1.msra.mxu0 0.0
    %398 = vmatprep.subr.mxu0 0.0
    %399 = vmatpush1.msra.mxu0 0.0
    %400 = vmatprep.mubr.f32.mxu0 0.0
    %v401 = vand.u32 %v137, 4294901760
    %v402 = vsub.f32 %v137, %v401
    %403 = vmatmul.mubr.f32.gmra.mrb[0].mxu0 %v402
    %v404 = vpop.f32.mrb[0].mxu0
    %v405 = vadd.f32 %v319, %v404
    %v406 = vpop.f32.mrb[0].mxu0
    %407 = vmatprep.mubr.f32.mxu0 0.0
    %v408 = vand.u32 %v140, 4294901760
    %v409 = vsub.f32 %v140, %v408
    %410 = vmatmul.mubr.f32.gmra.mrb[0].mxu0 %v409
    %v411 = vpop.f32.mrb[0].mxu0
    %v412 = vadd.f32 %v325, %v411
    %v413 = vpop.f32.mrb[0].mxu0
    %414 = vdwg.mxu0
    %415 = vmatprep.subr.mxu0 0.0
    %v416 = vand.u32 %v103, 4294901760
    %417 = vmatpush1.msra.mxu0 %v416
    %418 = vmatprep.subr.mxu0 0.0
    %v419 = vand.u32 %v104, 4294901760
    %420 = vmatpush1.msra.mxu0 %v419
    %421 = vmatprep.subr.mxu0 0.0
    %v422 = vand.u32 %v105, 4294901760
    %423 = vmatpush1.msra.mxu0 %v422
    %424 = vmatprep.subr.mxu0 0.0
    %v425 = vand.u32 %v106, 4294901760
    %426 = vmatpush1.msra.mxu0 %v425
    %427 = vmatprep.subr.mxu0 0.0
    %428 = vmatpush1.msra.mxu0 0.0
    %429 = vmatprep.subr.mxu0 0.0
    %430 = vmatpush1.msra.mxu0 0.0
    %431 = vmatprep.subr.mxu0 0.0
    %432 = vmatpush1.msra.mxu0 0.0
    %433 = vmatprep.subr.mxu0 0.0
    %434 = vmatpush1.msra.mxu0 0.0
    %435 = vmatprep.subr.mxu0 0.0
    %436 = vmatpush1.msra.mxu0 0.0
    %437 = vmatprep.subr.mxu0 0.0
    %438 = vmatpush1.msra.mxu0 0.0
    %439 = vmatprep.subr.mxu0 0.0
    %440 = vmatpush1.msra.mxu0 0.0
    %441 = vmatprep.subr.mxu0 0.0
    %442 = vmatpush1.msra.mxu0 0.0
    %443 = vmatprep.subr.mxu0 0.0
    %444 = vmatpush1.msra.mxu0 0.0
    %445 = vmatprep.subr.mxu0 0.0
    %446 = vmatpush1.msra.mxu0 0.0
    %447 = vmatprep.subr.mxu0 0.0
    %448 = vmatpush1.msra.mxu0 0.0
    %449 = vmatprep.subr.mxu0 0.0
    %450 = vmatpush1.msra.mxu0 0.0
    %451 = vmatprep.subr.mxu0 0.0
    %452 = vmatpush1.msra.mxu0 0.0
    %453 = vmatprep.subr.mxu0 0.0
    %454 = vmatpush1.msra.mxu0 0.0
    %455 = vmatprep.subr.mxu0 0.0
    %456 = vmatpush1.msra.mxu0 0.0
    %457 = vmatprep.subr.mxu0 0.0
    %458 = vmatpush1.msra.mxu0 0.0
    %459 = vmatprep.subr.mxu0 0.0
    %460 = vmatpush1.msra.mxu0 0.0
    %461 = vmatprep.subr.mxu0 0.0
    %462 = vmatpush1.msra.mxu0 0.0
    %463 = vmatprep.subr.mxu0 0.0
    %464 = vmatpush1.msra.mxu0 0.0
    %465 = vmatprep.subr.mxu0 0.0
    %466 = vmatpush1.msra.mxu0 0.0
    %467 = vmatprep.subr.mxu0 0.0
    %468 = vmatpush1.msra.mxu0 0.0
    %469 = vmatprep.subr.mxu0 0.0
    %470 = vmatpush1.msra.mxu0 0.0
    %471 = vmatprep.subr.mxu0 0.0
    %472 = vmatpush1.msra.mxu0 0.0
    %473 = vmatprep.subr.mxu0 0.0
    %474 = vmatpush1.msra.mxu0 0.0
    %475 = vmatprep.subr.mxu0 0.0
    %476 = vmatpush1.msra.mxu0 0.0
    %477 = vmatprep.subr.mxu0 0.0
    %478 = vmatpush1.msra.mxu0 0.0
    %479 = vmatprep.subr.mxu0 0.0
    %480 = vmatpush1.msra.mxu0 0.0
    %481 = vmatprep.subr.mxu0 0.0
    %482 = vmatpush1.msra.mxu0 0.0
    %483 = vmatprep.mubr.f32.mxu0 0.0
    %v484 = vand.u32 %v137, 4294901760
    %v485 = vsub.f32 %v137, %v484
    %v486 = vand.u32 %v485, 4294901760
    %487 = vmatmul.mubr.f32.gmra.mrb[0].mxu0 %v486
    %v488 = vpop.f32.mrb[0].mxu0
    %v489 = vadd.f32 %v405, %v488
    %v490 = vpop.f32.mrb[0].mxu0
    %491 = vmatprep.mubr.f32.mxu0 0.0
    %v492 = vand.u32 %v140, 4294901760
    %v493 = vsub.f32 %v140, %v492
    %v494 = vand.u32 %v493, 4294901760
    %495 = vmatmul.mubr.f32.gmra.mrb[0].mxu0 %v494
    %v496 = vpop.f32.mrb[0].mxu0
    %v497 = vadd.f32 %v412, %v496
    %v498 = vpop.f32.mrb[0].mxu0
    %499 = vdwg.mxu0
    %500 = vmatprep.subr.mxu0 0.0
    %v501 = vand.u32 %v103, 4294901760
    %v502 = vsub.f32 %v103, %v501
    %v503 = vand.u32 %v502, 4294901760
    %504 = vmatpush1.msra.mxu0 %v503
    %505 = vmatprep.subr.mxu0 0.0
    %v506 = vand.u32 %v104, 4294901760
    %v507 = vsub.f32 %v104, %v506
    %v508 = vand.u32 %v507, 4294901760
    %509 = vmatpush1.msra.mxu0 %v508
    %510 = vmatprep.subr.mxu0 0.0
    %v511 = vand.u32 %v105, 4294901760
    %v512 = vsub.f32 %v105, %v511
    %v513 = vand.u32 %v512, 4294901760
    %514 = vmatpush1.msra.mxu0 %v513
    %515 = vmatprep.subr.mxu0 0.0
    %v516 = vand.u32 %v106, 4294901760
    %v517 = vsub.f32 %v106, %v516
    %v518 = vand.u32 %v517, 4294901760
    %519 = vmatpush1.msra.mxu0 %v518
    %520 = vmatprep.subr.mxu0 0.0
    %521 = vmatpush1.msra.mxu0 0.0
    %522 = vmatprep.subr.mxu0 0.0
    %523 = vmatpush1.msra.mxu0 0.0
    %524 = vmatprep.subr.mxu0 0.0
    %525 = vmatpush1.msra.mxu0 0.0
    %526 = vmatprep.subr.mxu0 0.0
    %527 = vmatpush1.msra.mxu0 0.0
    %528 = vmatprep.subr.mxu0 0.0
    %529 = vmatpush1.msra.mxu0 0.0
    %530 = vmatprep.subr.mxu0 0.0
    %531 = vmatpush1.msra.mxu0 0.0
    %532 = vmatprep.subr.mxu0 0.0
    %533 = vmatpush1.msra.mxu0 0.0
    %534 = vmatprep.subr.mxu0 0.0
    %535 = vmatpush1.msra.mxu0 0.0
    %536 = vmatprep.subr.mxu0 0.0
    %537 = vmatpush1.msra.mxu0 0.0
    %538 = vmatprep.subr.mxu0 0.0
    %539 = vmatpush1.msra.mxu0 0.0
    %540 = vmatprep.subr.mxu0 0.0
    %541 = vmatpush1.msra.mxu0 0.0
    %542 = vmatprep.subr.mxu0 0.0
    %543 = vmatpush1.msra.mxu0 0.0
    %544 = vmatprep.subr.mxu0 0.0
    %545 = vmatpush1.msra.mxu0 0.0
    %546 = vmatprep.subr.mxu0 0.0
    %547 = vmatpush1.msra.mxu0 0.0
    %548 = vmatprep.subr.mxu0 0.0
    %549 = vmatpush1.msra.mxu0 0.0
    %550 = vmatprep.subr.mxu0 0.0
    %551 = vmatpush1.msra.mxu0 0.0
    %552 = vmatprep.subr.mxu0 0.0
    %553 = vmatpush1.msra.mxu0 0.0
    %554 = vmatprep.subr.mxu0 0.0
    %555 = vmatpush1.msra.mxu0 0.0
    %556 = vmatprep.subr.mxu0 0.0
    %557 = vmatpush1.msra.mxu0 0.0
    %558 = vmatprep.subr.mxu0 0.0
    %559 = vmatpush1.msra.mxu0 0.0
    %560 = vmatprep.subr.mxu0 0.0
    %561 = vmatpush1.msra.mxu0 0.0
    %562 = vmatprep.subr.mxu0 0.0
    %563 = vmatpush1.msra.mxu0 0.0
    %564 = vmatprep.subr.mxu0 0.0
    %565 = vmatpush1.msra.mxu0 0.0
    %566 = vmatprep.subr.mxu0 0.0
    %567 = vmatpush1.msra.mxu0 0.0
    %568 = vmatprep.subr.mxu0 0.0
    %569 = vmatpush1.msra.mxu0 0.0
    %570 = vmatprep.subr.mxu0 0.0
    %571 = vmatpush1.msra.mxu0 0.0
    %572 = vmatprep.subr.mxu0 0.0
    %573 = vmatpush1.msra.mxu0 0.0
    %574 = vmatprep.subr.mxu0 0.0
    %575 = vmatpush1.msra.mxu0 0.0
    %576 = vmatprep.mubr.f32.mxu0 0.0
    %v577 = vand.u32 %v137, 4294901760
    %578 = vmatmul.mubr.f32.gmra.mrb[0].mxu0 %v577
    %v579 = vpop.f32.mrb[0].mxu0
    %v580 = vadd.f32 %v489, %v579
    %v581 = vpop.f32.mrb[0].mxu0
    %582 = vmatprep.mubr.f32.mxu0 0.0
    %v583 = vand.u32 %v140, 4294901760
    %584 = vmatmul.mubr.f32.gmra.mrb[0].mxu0 %v583
    %v585 = vpop.f32.mrb[0].mxu0
    %v586 = vadd.f32 %v497, %v585
    %v587 = vpop.f32.mrb[0].mxu0
    %588 = vdwg.mxu0
    %589 = vmatprep.subr.mxu0 0.0
    %v590 = vand.u32 %v103, 4294901760
    %591 = vmatpush1.msra.mxu0 %v590
    %592 = vmatprep.subr.mxu0 0.0
    %v593 = vand.u32 %v104, 4294901760
    %594 = vmatpush1.msra.mxu0 %v593
    %595 = vmatprep.subr.mxu0 0.0
    %v596 = vand.u32 %v105, 4294901760
    %597 = vmatpush1.msra.mxu0 %v596
    %598 = vmatprep.subr.mxu0 0.0
    %v599 = vand.u32 %v106, 4294901760
    %600 = vmatpush1.msra.mxu0 %v599
    %601 = vmatprep.subr.mxu0 0.0
    %602 = vmatpush1.msra.mxu0 0.0
    %603 = vmatprep.subr.mxu0 0.0
    %604 = vmatpush1.msra.mxu0 0.0
    %605 = vmatprep.subr.mxu0 0.0
    %606 = vmatpush1.msra.mxu0 0.0
    %607 = vmatprep.subr.mxu0 0.0
    %608 = vmatpush1.msra.mxu0 0.0
    %609 = vmatprep.subr.mxu0 0.0
    %610 = vmatpush1.msra.mxu0 0.0
    %611 = vmatprep.subr.mxu0 0.0
    %612 = vmatpush1.msra.mxu0 0.0
    %613 = vmatprep.subr.mxu0 0.0
    %614 = vmatpush1.msra.mxu0 0.0
    %615 = vmatprep.subr.mxu0 0.0
    %616 = vmatpush1.msra.mxu0 0.0
    %617 = vmatprep.subr.mxu0 0.0
    %618 = vmatpush1.msra.mxu0 0.0
    %619 = vmatprep.subr.mxu0 0.0
    %620 = vmatpush1.msra.mxu0 0.0
    %621 = vmatprep.subr.mxu0 0.0
    %622 = vmatpush1.msra.mxu0 0.0
    %623 = vmatprep.subr.mxu0 0.0
    %624 = vmatpush1.msra.mxu0 0.0
    %625 = vmatprep.subr.mxu0 0.0
    %626 = vmatpush1.msra.mxu0 0.0
    %627 = vmatprep.subr.mxu0 0.0
    %628 = vmatpush1.msra.mxu0 0.0
    %629 = vmatprep.subr.mxu0 0.0
    %630 = vmatpush1.msra.mxu0 0.0
    %631 = vmatprep.subr.mxu0 0.0
    %632 = vmatpush1.msra.mxu0 0.0
    %633 = vmatprep.subr.mxu0 0.0
    %634 = vmatpush1.msra.mxu0 0.0
    %635 = vmatprep.subr.mxu0 0.0
    %636 = vmatpush1.msra.mxu0 0.0
    %637 = vmatprep.subr.mxu0 0.0
    %638 = vmatpush1.msra.mxu0 0.0
    %639 = vmatprep.subr.mxu0 0.0
    %640 = vmatpush1.msra.mxu0 0.0
    %641 = vmatprep.subr.mxu0 0.0
    %642 = vmatpush1.msra.mxu0 0.0
    %643 = vmatprep.subr.mxu0 0.0
    %644 = vmatpush1.msra.mxu0 0.0
    %645 = vmatprep.subr.mxu0 0.0
    %646 = vmatpush1.msra.mxu0 0.0
    %647 = vmatprep.subr.mxu0 0.0
    %648 = vmatpush1.msra.mxu0 0.0
    %649 = vmatprep.subr.mxu0 0.0
    %650 = vmatpush1.msra.mxu0 0.0
    %651 = vmatprep.subr.mxu0 0.0
    %652 = vmatpush1.msra.mxu0 0.0
    %653 = vmatprep.subr.mxu0 0.0
    %654 = vmatpush1.msra.mxu0 0.0
    %655 = vmatprep.subr.mxu0 0.0
    %656 = vmatpush1.msra.mxu0 0.0
    %657 = vmatprep.mubr.f32.mxu0 0.0
    %v658 = vand.u32 %v137, 4294901760
    %659 = vmatmul.mubr.f32.gmra.mrb[0].mxu0 %v658
    %v660 = vpop.f32.mrb[0].mxu0
    %v661 = vadd.f32 %v580, %v660
    %v662 = vpop.f32.mrb[0].mxu0
    %663 = vmatprep.mubr.f32.mxu0 0.0
    %v664 = vand.u32 %v140, 4294901760
    %665 = vmatmul.mubr.f32.gmra.mrb[0].mxu0 %v664
    %v666 = vpop.f32.mrb[0].mxu0
    %v667 = vadd.f32 %v586, %v666
    %v668 = vpop.f32.mrb[0].mxu0
    %669 = vdwg.mxu0
    %vm670 = vcmask 130048
    %671 = vst.msk [vmem:[#allocation2] sm:$0xff] %vm670, %v661
    %672 = vst.msk [vmem:[#allocation2 + $0x8] sm:$0xff] %vm670, %v667
    // Predicated region
    $region30: #{gaussian_linear.1} parent=1 // pred_check
      _
    $region31: #{gaussian_linear.1} parent=1 // pred_check_branch
      %674 = sbr.rel (0) target = $region33
    $region32: #{gaussian_linear.1} parent=1 // pred_region
      %s676 = ssub.s32 256, 256
      %677 = vsyncadd [#allocation3], %s676
      %s678 = sshll.u32 [#allocation2], 4
      %s679 = int_to_ptr.vmem [resolvable:$true] %s678
      %684 = dma.vmem_to_hbm [thread:$0]  %s679, 256, %s7, [#allocation3], 128, 128, 8
    $region33: #{gaussian_linear.1} parent=1 // pred_fallthru
      _
    // Predicated region
    $region34: #{gaussian_linear.1} parent=1 // pred_check
      _
    $region35: #{gaussian_linear.1} parent=1 // pred_check_branch
      %686 = sbr.rel (0) target = $region37
    $region36: #{gaussian_linear.1} parent=1 // pred_region
      %687 = dma.done [#allocation3], 256
    $region37: #{gaussian_linear.1} parent=1 // pred_fallthru
      _
    %688 = vsyncpa [#allocation3], 1

</llo_original>
